<compile_context>
chip_gen: v6e
topology: v6e:2x2x1
jax: 0.10.0
libtpu: 0.0.40
codegen_flags: <defaults>
</compile_context>

<pallas_src>
import functools

import jax
import jax.numpy as jnp
from jax import lax
from jax.experimental import pallas as pl
from jax.experimental.pallas import tpu as pltpu


def _round_up(x, m):
    return ((x + m - 1) // m) * m


def _vmem_cap_bytes():
    """Generation-aware VMEM budget: ~80% of physical VMEM.

    v5e/v6e: ~102 MiB of 128 MiB; v7x: ~51 MiB of 64 MiB. Leaves headroom for
    compiler-internal scratch.
    """
    try:
        info = pltpu.get_tpu_info()
        cap = getattr(info, "vmem_capacity_bytes", None)
        if cap:
            return int(cap * 0.8)
    except Exception:
        pass
    return 48 << 20  # conservative fallback (safe even on v7x's 64 MiB)


def _normalize_cols_kernel(che_t_ref, out_ref):
    """L2-normalize the COLUMNS of the (D, M) transposed chelsa matrix.

    Equivalent to row-normalizing chelsa (dim=1 in the PyTorch module) and caching
    it transposed, so the main kernel's matmul contracts lhs-last against rhs-first
    (MXU-native orientation) with no per-step transpose.
    """
    bt = che_t_ref[...].astype(jnp.float32)              # (D, M)
    ss = jnp.sum(bt * bt, axis=0, keepdims=True)         # (1, M)
    out_ref[...] = bt * lax.rsqrt(ss)                    # rsqrt -> EUP slot


def _regress_sim_partial_kernel(loc_ref, bnt_ref, sim_ref, out_ref, *, n_total, tn):
    """One grid step: a (tn, D) tile of loc rows against ALL chelsa columns.

    loc_ref : (tn, D)      VMEM  tile of loc_month_emb
    bnt_ref : (D,  M)      VMEM  cached row-normalized chelsa, transposed (resident)
    sim_ref : (tn, M)      VMEM  matching tile of the target similarity matrix
    out_ref : (1, 1, 128)  VMEM  this tile's partial sum of squared errors
                                 (lane-broadcast; wrapper reads lane 0)
    """
    i = pl.program_id(0)

    # Normalize this tile of loc rows (rsqrt -> EUP, multiply -> VPU).
    a = loc_ref[...].astype(jnp.float32)
    a = a * lax.rsqrt(jnp.sum(a * a, axis=1, keepdims=True))

    # MXU-native (tn, D) x (D, M) matmul: M lands on the output lane axis.
    logits = jnp.dot(a, bnt_ref[...], preferred_element_type=jnp.float32)

    diff = logits - sim_ref[...].astype(jnp.float32)
    sq = diff * diff

    def write(partial):
        out_ref[...] = jnp.full((1, 1, 128), partial, dtype=jnp.float32)

    if n_total % tn != 0:
        last = pl.num_programs(0) - 1

        @pl.when(i != last)
        def _():
            write(jnp.sum(sq))

        @pl.when(i == last)
        def _():
            # Padded tail rows carry NaN/Inf from rsqrt of junk; select drops them
            # before the reduction (select does not propagate NaN from the dead arm).
            row = lax.broadcasted_iota(jnp.int32, sq.shape, 0)
            valid = (i * tn + row) < n_total
            write(jnp.sum(jnp.where(valid, sq, jnp.float32(0.0))))
    else:
        write(jnp.sum(sq))


def regress_similarity_loss(loc_month_emb, chelsa_emb, similarity, *, tn=512):
    """Pallas implementation of RegressSimilarityLoss.forward (returns scalar)."""
    N, D = loc_month_emb.shape
    M, D2 = chelsa_emb.shape
    assert D == D2, "feature dims must match"
    assert similarity.shape == (N, M)

    cap = _vmem_cap_bytes()

    # ---- Stage 1: normalize chelsa rows once, cached transposed as (D, M) f32. ----
    # The wrapper-side .T is one-time layout plumbing so the kernel only does a
    # sublane reduce + broadcast multiply (no in-kernel transpose needed).
    che_t = chelsa_emb.T                                   # (D, M)
    est1 = M * D * chelsa_emb.dtype.itemsize + M * D * 4 + (2 << 20)
    bnorm_t = pl.pallas_call(
        _normalize_cols_kernel,
        out_shape=jax.ShapeDtypeStruct((D, M), jnp.float32),
        compiler_params=pltpu.CompilerParams(
            vmem_limit_bytes=int(min(max(est1, 16 << 20), cap))),
    )(che_t)

    # ---- Stage 2: row-tiled logits + squared-error partial sums (parallel grid). ----
    tn = min(_round_up(tn, 8), _round_up(N, 8))

    def est(t):
        return (2 * t * D * loc_month_emb.dtype.itemsize    # loc tiles (double-buf)
                + 2 * t * M * similarity.dtype.itemsize     # sim tiles (double-buf)
                + 2 * D * M * 4                              # resident bnorm_t
                + (2 << 20))                                 # margin

    while est(tn) > cap and tn > 8:
        tn = max(_round_up(tn // 2, 8), 8)
    # TODO(synk): if est(tn) still exceeds the cap (very large M*D, esp. on v7x's
    # 64 MiB), add a second grid axis over M (2-D tiling of sim/bnorm_t) instead of
    # shrinking tn further.

    grid_n = pl.cdiv(N, tn)
    kernel = functools.partial(_regress_sim_partial_kernel, n_total=N, tn=tn)

    partials = pl.pallas_call(
        kernel,
        out_shape=jax.ShapeDtypeStruct((grid_n, 1, 128), jnp.float32),
        grid=(grid_n,),
        in_specs=[
            pl.BlockSpec((tn, D), lambda i: (i, 0)),   # loc rows tile
            pl.BlockSpec((D, M), lambda i: (0, 0)),    # normalized chelsa^T (resident)
            pl.BlockSpec((tn, M), lambda i: (i, 0)),   # similarity target tile
        ],
        out_specs=pl.BlockSpec((1, 1, 128), lambda i: (i, 0, 0)),
        compiler_params=pltpu.CompilerParams(
            dimension_semantics=("parallel",),          # shard row tiles across TCs
            vmem_limit_bytes=int(min(max(est(tn), 16 << 20), cap)),
        ),
    )(loc_month_emb, bnorm_t, similarity)

    # Finish the mean in the wrapper (tiny reduction over grid_n partials).
    return jnp.sum(partials[:, 0, 0]) / jnp.float32(N * M)


def _reference(loc, che, sim):
    a = loc / jnp.linalg.norm(loc, axis=1, keepdims=True)
    b = che / jnp.linalg.norm(che, axis=1, keepdims=True)
    logits = a @ b.T
    return jnp.mean((logits - sim) ** 2)


if __name__ == "__main__":
    key = jax.random.PRNGKey(0)
    k1, k2, k3 = jax.random.split(key, 3)

    # Small shapes: N loc/month samples, M chelsa samples, D hidden dim.
    N, M, D = 16, 8, 32
    loc_month_emb = jax.random.normal(k1, (N, D), dtype=jnp.float32)
    chelsa_emb = jax.random.normal(k2, (M, D), dtype=jnp.float32)
    similarity = jax.random.uniform(k3, (N, M), dtype=jnp.float32,
                                    minval=-1.0, maxval=1.0)

    loss = regress_similarity_loss(loc_month_emb, chelsa_emb, similarity)
    loss = jax.block_until_ready(loss)

    ref = _reference(loc_month_emb, chelsa_emb, similarity)
    assert jnp.allclose(loss, ref, rtol=1e-5, atol=1e-5), (loss, ref)

    # Also exercise the cdiv / last-tile mask path (N not divisible by tile size).
    N2 = 20
    loc2 = jax.random.normal(k1, (N2, D), dtype=jnp.float32)
    sim2 = jax.random.uniform(k3, (N2, M), dtype=jnp.float32, minval=-1.0, maxval=1.0)
    loss2 = jax.block_until_ready(
        regress_similarity_loss(loc2, chelsa_emb, sim2, tn=16))
    ref2 = _reference(loc2, chelsa_emb, sim2)
    assert jnp.allclose(loss2, ref2, rtol=1e-5, atol=1e-5), (loss2, ref2)

    print("KERNEL_OK")
</pallas_src>

<mosaic_0001>
module attributes {stable_mosaic.version = 11 : i64} {
  func.func @_normalize_cols_kernel(%arg0: memref<32x8xf32, #tpu.memory_space<vmem>>, %arg1: memref<32x8xf32, #tpu.memory_space<vmem>>) attributes {dimension_semantics = [], scalar_prefetch = 0 : i64, scratch_operands = 0 : i64, tpu.core_type = #tpu.core_type<tc>} {
    %c0 = arith.constant 0 : index
    %c0_0 = arith.constant 0 : index
    %0 = vector.load %arg0[%c0, %c0_0] : memref<32x8xf32, #tpu.memory_space<vmem>>, vector<32x8xf32>
    %1 = arith.mulf %0, %0 : vector<32x8xf32>
    %cst = arith.constant dense<0.000000e+00> : vector<8xf32>
    %2 = vector.multi_reduction <add>, %1, %cst [0] : vector<32x8xf32> to vector<8xf32>
    %3 = vector.shape_cast %2 : vector<8xf32> to vector<1x8xf32>
    %4 = math.rsqrt %3 : vector<1x8xf32>
    %5 = vector.broadcast %4 : vector<1x8xf32> to vector<32x8xf32>
    %6 = arith.mulf %0, %5 : vector<32x8xf32>
    %c0_1 = arith.constant 0 : index
    %c0_2 = arith.constant 0 : index
    %7 = vector.load %arg1[%c0_1, %c0_2] : memref<32x8xf32, #tpu.memory_space<vmem>>, vector<32x8xf32>
    tpu.vector_store %arg1[%c0_1, %c0_2], %6 {strides = array<i32>} : memref<32x8xf32, #tpu.memory_space<vmem>>, vector<32x8xf32>,
    return
  }
}

</mosaic_0001>

<llo_original>
// kernel: tpu_custom_call.1
$region0: #{tpu_custom_call.1}
  #allocation0 [shape = 'u32[]', space=smem, size = 0x4, offset = 0x4, fixed_abs, tag = 'smem constant byte address 0x4 - core index']
  #allocation1 [shape = 'u32[144,128]{1,0:T(1,128)}', space=vmem, size = 0x12000, scoped, tag = 'internal scratch']
  %s0 = inlined_call_operand.vmem [shape: f32[32,8], index: 0, kind: input, shape index: {}]
  %s1 = inlined_call_operand.vmem [shape: f32[32,8], index: 1, kind: output, shape index: {}]
  %s2 = sld [smem:[#allocation0]]
  $region14: #{tpu_custom_call.1} parent=0
    _
  %s4 = ssub.s32 1, %s2
  %s5 = scalar_select 0, %s4, %s2
  // Predicated region
  $region2: #{tpu_custom_call.1} parent=0 // pred_check
    _
  $region3: #{tpu_custom_call.1} parent=0 // pred_check_branch
    %7 = sbr.rel (0) target = $region5
  $region4: #{tpu_custom_call.1} parent=0 // pred_region
    _
  $region5: #{tpu_custom_call.1} parent=0 // pred_fallthru
    _
  %v8 = vld [vmem:[%s0] sm:$0xff]
  %v9 = vld [vmem:[%s0 + $0x8] sm:$0xff]
  %v10 = vld [vmem:[%s0 + $0x10] sm:$0xff]
  %v11 = vld [vmem:[%s0 + $0x18] sm:$0xff]
  %v12 = vmul.f32 %v8, %v8
  %v13 = vmul.f32 %v9, %v9
  %v14 = vmul.f32 %v10, %v10
  %v15 = vmul.f32 %v11, %v11
  %vm16 = vcmask 64512
  %v17 = vsel %vm16, %v12, 0.0
  %v18 = vsel %vm16, %v13, 0.0
  %v19 = vadd.f32 %v17, %v18
  %v20 = vsel %vm16, %v14, 0.0
  %v21 = vadd.f32 %v19, %v20
  %v22 = vsel %vm16, %v15, 0.0
  %v23 = vadd.f32 %v21, %v22
  %v24 = vrot.slane %v23, 4
  %v25 = vadd.f32 %v23, %v24
  %v26 = vrot.slane %v25, 2
  %v27 = vadd.f32 %v25, %v26
  %v28 = vrot.slane %v27, 1
  %v29 = vadd.f32 %v27, %v28
  %v30 = vrsqrt.pop %v29
  %v31 = vmul.f32 %v8, %v30
  %v32 = vmul.f32 %v9, %v30
  %v33 = vmul.f32 %v10, %v30
  %v34 = vmul.f32 %v11, %v30
  %35 = vst.msk [vmem:[%s1] sm:$0xff] %vm16, %v31
  %36 = vst.msk [vmem:[%s1 + $0x8] sm:$0xff] %vm16, %v32
  %37 = vst.msk [vmem:[%s1 + $0x10] sm:$0xff] %vm16, %v33
  %38 = vst.msk [vmem:[%s1 + $0x18] sm:$0xff] %vm16, %v34
  // Predicated region
  $region6: #{tpu_custom_call.1} parent=0 // pred_check
    _
  $region7: #{tpu_custom_call.1} parent=0 // pred_check_branch
    %40 = sbr.rel (0) target = $region9
  $region8: #{tpu_custom_call.1} parent=0 // pred_region
    _
  $region9: #{tpu_custom_call.1} parent=0 // pred_fallthru
    _
  // Predicated region
  $region10: #{tpu_custom_call.1} parent=0 // pred_check
    _
  $region11: #{tpu_custom_call.1} parent=0 // pred_check_branch
    %42 = sbr.rel (0) target = $region13
  $region12: #{tpu_custom_call.1} parent=0 // pred_region
    _
  $region13: #{tpu_custom_call.1} parent=0 // pred_fallthru
    _

</llo_original>
